<compile_context>
chip_gen: v7x
topology: tpu7x:2x2x1
jax: 0.10.0
libtpu: 0.0.40
codegen_flags: <defaults>
</compile_context>

<pallas_src>
import jax
import jax.numpy as jnp
from jax.experimental import pallas as pl
from jax.experimental.pallas import tpu as pltpu


def _round_up(x, m):
    return ((x + m - 1) // m) * m


# ----------------------------------------------------------------------------
# Kernels: one fused affine map + exp.  Negation is folded into the params.
# ----------------------------------------------------------------------------
def gennn_fused_kernel(alpha_ref, wn_ref, bn_ref, out_ref):
    # (tb, d_in) @ (d_in, d_out) on the MXU, f32 accumulation.
    z = jnp.dot(alpha_ref[...], wn_ref[...], preferred_element_type=jnp.float32)
    # chat = exp(-(alpha @ Wf + bf)) == exp(alpha @ Wn + bn)   (EUP exp)
    out_ref[...] = jnp.exp(z + bn_ref[...]).astype(out_ref.dtype)


def gennn_fused_kernel_vpu(alpha_ref, wn_ref, bn_ref, out_ref):
    # Tiny-K path: unrolled broadcast multiply-adds on the VPU instead of a
    # mostly-idle MXU pass + MRF drain.  Used for single-grid-step small-B calls.
    a = alpha_ref[...]                      # (tb, d_in)
    w = wn_ref[...]                         # (d_in, d_out)
    z = bn_ref[...]                         # (1, d_out) -> broadcasts over rows
    for k in range(a.shape[1]):             # static unroll, d_in is tiny
        z = z + a[:, k:k + 1] * w[k:k + 1, :]
    out_ref[...] = jnp.exp(z).astype(out_ref.dtype)


# ----------------------------------------------------------------------------
# One-time parameter preparation (outside the hot path).  No lane padding.
# ----------------------------------------------------------------------------
def prepare_fused_params(w1, b1, w2, b2):
    """w1:(H,d_in) b1:(H,) w2:(d_out,H) b2:(d_out,)  ->  (Wn:(d_in,d_out), bn:(1,d_out))."""
    w1 = jnp.asarray(w1, jnp.float32)
    b1 = jnp.asarray(b1, jnp.float32)
    w2 = jnp.asarray(w2, jnp.float32)
    b2 = jnp.asarray(b2, jnp.float32)

    wf = w1.T @ w2.T                        # (d_in, d_out)
    bf = b1 @ w2.T + b2                     # (d_out,)
    wn = -wf
    bn = (-bf).reshape(1, -1)               # (1, d_out)
    return wn, bn


# ----------------------------------------------------------------------------
# Forward wrapper: cdiv grid over the batch dim, weights resident, exact
# (B, d_out) output (no padding, no post-slice).
# ----------------------------------------------------------------------------
def gennn_forward_fused(alpha, wn, bn, it_ind=None, block_b=8192,
                        use_vpu_small_b=True):
    """alpha: (B, d_in); wn: (d_in, d_out); bn: (1, d_out)."""
    del it_ind  # unused in the reference forward
    alpha = jnp.asarray(alpha, jnp.float32)
    B, d_in = alpha.shape
    d_out = wn.shape[1]

    # Batch tile: big enough to amortize per-grid-step overhead, capped by
    # block_b; aim for >=4 grid steps at large B (v7x megacore); always a
    # multiple of 8 (sublane alignment), regardless of caller-supplied block_b.
    tb = min(block_b, max(8, pl.cdiv(B, 4)))
    tb = _round_up(min(tb, B), 8)

    grid = (pl.cdiv(B, tb),)

    kernel = gennn_fused_kernel
    if use_vpu_small_b and grid[0] == 1 and d_in <= 8:
        kernel = gennn_fused_kernel_vpu

    out = pl.pallas_call(
        kernel,
        out_shape=jax.ShapeDtypeStruct((B, d_out), jnp.float32),
        grid=grid,
        in_specs=[
            # alpha: tiled over batch; last dim d_in == full array dim (legal).
            pl.BlockSpec((tb, d_in), lambda i: (i, 0)),
            # fused weight / bias: tiny, whole-array resident.
            pl.BlockSpec((d_in, d_out), lambda i: (0, 0)),
            pl.BlockSpec((1, d_out), lambda i: (0, 0)),
        ],
        # output block last dim == d_out == full array dim: no lane padding,
        # ragged last batch block is masked by Pallas (no jnp.pad / no slice).
        out_specs=pl.BlockSpec((tb, d_out), lambda i: (i, 0)),
        compiler_params=pltpu.CompilerParams(
            dimension_semantics=("parallel",),  # shards batch across v7x's 2 TCs
        ),
        cost_estimate=pl.CostEstimate(
            flops=2 * B * d_in * d_out,
            bytes_accessed=(B * (d_in + d_out) + d_in * d_out + d_out) * 4,
            transcendentals=B * d_out,
        ),
    )(alpha, wn, bn)
    return out


# Convenience: accepts raw (PyTorch-layout) params; fusion done here once.
def gennn_forward(alpha, w1, b1, w2, b2, it_ind=None):
    wn, bn = prepare_fused_params(w1, b1, w2, b2)
    return gennn_forward_fused(alpha, wn, bn, it_ind=it_ind)


def init_gennn_params(key, d_in, H, d_out):
    """Deterministic init mirroring nn.Linear shapes (uniform +/- 1/sqrt(fan_in))."""
    k1, k2, k3, k4 = jax.random.split(key, 4)
    bound1 = 1.0 / jnp.sqrt(jnp.float32(d_in))
    bound2 = 1.0 / jnp.sqrt(jnp.float32(H))
    w1 = jax.random.uniform(k1, (H, d_in), jnp.float32, -bound1, bound1)
    b1 = jax.random.uniform(k2, (H,), jnp.float32, -bound1, bound1)
    w2 = jax.random.uniform(k3, (d_out, H), jnp.float32, -bound2, bound2)
    b2 = jax.random.uniform(k4, (d_out,), jnp.float32, -bound2, bound2)
    return w1, b1, w2, b2


if __name__ == "__main__":
    key = jax.random.PRNGKey(0)
    k_in, k_par, k_big = jax.random.split(key, 3)

    # Small shapes consistent with the module: batch=8, d_in=4, H=32, d_out=16.
    B, d_in, H, d_out = 8, 4, 32, 16
    alpha = jax.random.normal(k_in, (B, d_in), jnp.float32)
    w1, b1, w2, b2 = init_gennn_params(k_par, d_in, H, d_out)

    # One-time fused/negated param prep (outside the hot path).
    wn, bn = prepare_fused_params(w1, b1, w2, b2)

    # Pure-JAX reference (unfused, same as the PyTorch module).
    ref = jnp.exp(-((alpha @ w1.T + b1) @ w2.T + b2))

    # Small-B path (single grid step -> VPU multiply-add kernel).
    chat = gennn_forward_fused(alpha, wn, bn, it_ind=0)
    chat = jax.block_until_ready(chat)
    assert chat.shape == (B, d_out)
    assert jnp.allclose(chat, ref, rtol=1e-5, atol=1e-5)

    # Same shapes, forced MXU path.
    chat_mxu = gennn_forward_fused(alpha, wn, bn, it_ind=0, use_vpu_small_b=False)
    chat_mxu = jax.block_until_ready(chat_mxu)
    assert jnp.allclose(chat_mxu, ref, rtol=1e-5, atol=1e-5)

    # Gridded / pipelined path with a non-tile-multiple batch (ragged last block).
    B2 = 1000
    alpha2 = jax.random.normal(k_big, (B2, d_in), jnp.float32)
    chat2 = gennn_forward_fused(alpha2, wn, bn, it_ind=0)
    chat2 = jax.block_until_ready(chat2)
    ref2 = jnp.exp(-((alpha2 @ w1.T + b1) @ w2.T + b2))
    assert chat2.shape == (B2, d_out)
    assert jnp.allclose(chat2, ref2, rtol=1e-5, atol=1e-5)

    print("KERNEL_OK")
</pallas_src>

<mosaic_0001>
module attributes {stable_mosaic.version = 11 : i64} {
  func.func @gennn_fused_kernel_vpu(%arg0: i32, %arg1: memref<8x4xf32, #tpu.memory_space<vmem>>, %arg2: memref<4x16xf32, #tpu.memory_space<vmem>>, %arg3: memref<1x16xf32, #tpu.memory_space<vmem>>, %arg4: memref<8x16xf32, #tpu.memory_space<vmem>>) attributes {dimension_semantics = [#tpu.dimension_semantics<parallel>], iteration_bounds = array<i64: 1>, scalar_prefetch = 0 : i64, scratch_operands = 0 : i64, tpu.core_type = #tpu.core_type<tc>, window_params = [{transform_indices = @transform_0, window_bounds = array<i64: 8, 4>}, {pipeline_mode = #tpu.pipeline_mode<synchronous>, transform_indices = @transform_1, window_bounds = array<i64: 4, 16>}, {pipeline_mode = #tpu.pipeline_mode<synchronous>, transform_indices = @transform_2, window_bounds = array<i64: 1, 16>}, {transform_indices = @transform_3, window_bounds = array<i64: 8, 16>}]} {
    %c0 = arith.constant 0 : index
    %c0_0 = arith.constant 0 : index
    %0 = vector.load %arg1[%c0, %c0_0] : memref<8x4xf32, #tpu.memory_space<vmem>>, vector<8x4xf32>
    %c0_1 = arith.constant 0 : index
    %c0_2 = arith.constant 0 : index
    %1 = vector.load %arg2[%c0_1, %c0_2] : memref<4x16xf32, #tpu.memory_space<vmem>>, vector<4x16xf32>
    %c0_3 = arith.constant 0 : index
    %c0_4 = arith.constant 0 : index
    %2 = vector.load %arg3[%c0_3, %c0_4] : memref<1x16xf32, #tpu.memory_space<vmem>>, vector<1x16xf32>
    %3 = vector.extract_strided_slice %0 {offsets = [0, 0], sizes = [8, 1], strides = [1, 1]} : vector<8x4xf32> to vector<8x1xf32>
    %4 = vector.extract_strided_slice %1 {offsets = [0, 0], sizes = [1, 16], strides = [1, 1]} : vector<4x16xf32> to vector<1x16xf32>
    %5 = vector.broadcast %3 : vector<8x1xf32> to vector<8x16xf32>
    %6 = vector.broadcast %4 : vector<1x16xf32> to vector<8x16xf32>
    %7 = arith.mulf %5, %6 : vector<8x16xf32>
    %8 = vector.broadcast %2 : vector<1x16xf32> to vector<8x16xf32>
    %9 = arith.addf %8, %7 : vector<8x16xf32>
    %10 = vector.extract_strided_slice %0 {offsets = [0, 1], sizes = [8, 1], strides = [1, 1]} : vector<8x4xf32> to vector<8x1xf32>
    %11 = vector.extract_strided_slice %1 {offsets = [1, 0], sizes = [1, 16], strides = [1, 1]} : vector<4x16xf32> to vector<1x16xf32>
    %12 = vector.broadcast %10 : vector<8x1xf32> to vector<8x16xf32>
    %13 = vector.broadcast %11 : vector<1x16xf32> to vector<8x16xf32>
    %14 = arith.mulf %12, %13 : vector<8x16xf32>
    %15 = arith.addf %9, %14 : vector<8x16xf32>
    %16 = vector.extract_strided_slice %0 {offsets = [0, 2], sizes = [8, 1], strides = [1, 1]} : vector<8x4xf32> to vector<8x1xf32>
    %17 = vector.extract_strided_slice %1 {offsets = [2, 0], sizes = [1, 16], strides = [1, 1]} : vector<4x16xf32> to vector<1x16xf32>
    %18 = vector.broadcast %16 : vector<8x1xf32> to vector<8x16xf32>
    %19 = vector.broadcast %17 : vector<1x16xf32> to vector<8x16xf32>
    %20 = arith.mulf %18, %19 : vector<8x16xf32>
    %21 = arith.addf %15, %20 : vector<8x16xf32>
    %22 = vector.extract_strided_slice %0 {offsets = [0, 3], sizes = [8, 1], strides = [1, 1]} : vector<8x4xf32> to vector<8x1xf32>
    %23 = vector.extract_strided_slice %1 {offsets = [3, 0], sizes = [1, 16], strides = [1, 1]} : vector<4x16xf32> to vector<1x16xf32>
    %24 = vector.broadcast %22 : vector<8x1xf32> to vector<8x16xf32>
    %25 = vector.broadcast %23 : vector<1x16xf32> to vector<8x16xf32>
    %26 = arith.mulf %24, %25 : vector<8x16xf32>
    %27 = arith.addf %21, %26 : vector<8x16xf32>
    %28 = math.exp %27 : vector<8x16xf32>
    %c0_5 = arith.constant 0 : index
    %c0_6 = arith.constant 0 : index
    %29 = vector.load %arg4[%c0_5, %c0_6] : memref<8x16xf32, #tpu.memory_space<vmem>>, vector<8x16xf32>
    tpu.vector_store %arg4[%c0_5, %c0_6], %28 {strides = array<i32>} : memref<8x16xf32, #tpu.memory_space<vmem>>, vector<8x16xf32>,
    return
  }
  func.func @transform_0(%arg0: i32) -> (i32, i32) {
    %c0_i32 = arith.constant 0 : i32
    %c0_i32_0 = arith.constant 0 : i32
    return %arg0, %c0_i32 : i32, i32
  }
  func.func @transform_1(%arg0: i32) -> (i32, i32) {
    %c0_i32 = arith.constant 0 : i32
    %c0_i32_0 = arith.constant 0 : i32
    %c0_i32_1 = arith.constant 0 : i32
    return %c0_i32, %c0_i32_0 : i32, i32
  }
  func.func @transform_2(%arg0: i32) -> (i32, i32) {
    %c0_i32 = arith.constant 0 : i32
    %c0_i32_0 = arith.constant 0 : i32
    %c0_i32_1 = arith.constant 0 : i32
    return %c0_i32, %c0_i32_0 : i32, i32
  }
  func.func @transform_3(%arg0: i32) -> (i32, i32) {
    %c0_i32 = arith.constant 0 : i32
    %c0_i32_0 = arith.constant 0 : i32
    return %arg0, %c0_i32 : i32, i32
  }
}

</mosaic_0001>

<llo_original>
// kernel: tpu_custom_call.1
$region0: #{tpu_custom_call.1}
  #allocation0 [shape = 'u32[]', space=smem, size = 0x4, offset = 0x4, fixed_abs, tag = 'smem constant byte address 0x4 - core index']
  #allocation1 [shape = 'u32[144,128]{1,0:T(1,128)}', space=vmem, size = 0x12000, scoped, tag = 'internal scratch']
  %s0 = inlined_call_operand.vmem [shape: f32[8,4], index: 0, kind: input, shape index: {}]
  %s1 = inlined_call_operand.vmem [shape: f32[4,16], index: 1, kind: input, shape index: {}]
  %s2 = inlined_call_operand.vmem [shape: f32[1,16], index: 2, kind: input, shape index: {}]
  %s3 = inlined_call_operand.hbm [shape: f32[8,16], index: 3, kind: output, shape index: {}]
  %s4 = sld [smem:[#allocation0]]
  $region22: #{tpu_custom_call.1} parent=0
    _
  %s6 = ssub.s32 1, %s4
  %s7 = scalar_select 0, %s6, %s4
  $region1: #{tpu_custom_call.1} parent=0
    #allocation2 [shape = 'u8[4096]{0}', space=vmem, size = 0x1000, scoped, tag = 'output window, operand 0, single buffered']
    #allocation3 [shape = 's32[1]{0}', space=sflag, size = 0x4, scoped, tag = 'scoped memory for tpu_custom_call.1']
    %8 = vsyncpa [#allocation3], 0
    // Predicated region
    $region2: #{tpu_custom_call.1} parent=1 // pred_check
      _
    $region3: #{tpu_custom_call.1} parent=1 // pred_check_branch
      %10 = sbr.rel (0) target = $region5
    $region4: #{tpu_custom_call.1} parent=1 // pred_region
      _
    $region5: #{tpu_custom_call.1} parent=1 // pred_fallthru
      _
    // Predicated region
    $region6: #{tpu_custom_call.1} parent=1 // pred_check
      _
    $region7: #{tpu_custom_call.1} parent=1 // pred_check_branch
      %12 = sbr.rel (0) target = $region9
    $region8: #{tpu_custom_call.1} parent=1 // pred_region
      _
    $region9: #{tpu_custom_call.1} parent=1 // pred_fallthru
      _
    // Predicated region
    $region10: #{tpu_custom_call.1} parent=1 // pred_check
      _
    $region11: #{tpu_custom_call.1} parent=1 // pred_check_branch
      %14 = sbr.rel (0) target = $region13
    $region12: #{tpu_custom_call.1} parent=1 // pred_region
      _
    $region13: #{tpu_custom_call.1} parent=1 // pred_fallthru
      _
    %v15 = vld [vmem:[%s0] sm:$0xff]
    %v16 = vld [vmem:[%s1] sm:$0xf]
    %v17 = vld [vmem:[%s2] sm:$0x1]
    %19 = vset.pattern.permute.xlu0 0
    %20 = vperm.xlu0 %19, %v15
    %v21 = vpop.permute.xlu0 %20
    %v23 = vlaneseq
    %v24 = vshrl.u32 %v23, 7
    %v25 = vsub.s32 0, %v24
    %v26 = vrot.slane %v16, %v25
    %v27 = vmul.f32 %v21, %v26
    %v29 = vlaneseq
    %v30 = vshrl.u32 %v29, 7
    %v31 = vsub.s32 0, %v30
    %v32 = vrot.slane %v17, %v31
    %v34 = vadd.f32 %v32, %v27
    %35 = vset.pattern.permute.xlu0 1
    %36 = vperm.xlu0 %35, %v15
    %v37 = vpop.permute.xlu0 %36
    %v39 = vlaneseq
    %v40 = vshrl.u32 %v39, 7
    %v41 = vsub.s32 1, %v40
    %v42 = vrot.slane %v16, %v41
    %v43 = vmul.f32 %v37, %v42
    %v44 = vadd.f32 %v34, %v43
    %45 = vset.pattern.permute.xlu0 2
    %46 = vperm.xlu0 %45, %v15
    %v47 = vpop.permute.xlu0 %46
    %v49 = vlaneseq
    %v50 = vshrl.u32 %v49, 7
    %v51 = vsub.s32 2, %v50
    %v52 = vrot.slane %v16, %v51
    %v53 = vmul.f32 %v47, %v52
    %v54 = vadd.f32 %v44, %v53
    %55 = vset.pattern.permute.xlu0 3
    %56 = vperm.xlu0 %55, %v15
    %v57 = vpop.permute.xlu0 %56
    %v59 = vlaneseq
    %v60 = vshrl.u32 %v59, 7
    %v61 = vsub.s32 3, %v60
    %v62 = vrot.slane %v16, %v61
    %v63 = vmul.f32 %v57, %v62
    %v64 = vadd.f32 %v54, %v63
    %v65 = vmul.f32 %v64, 1.442695
    %v66 = vpow.pop %v65
    %vm67 = vcmask 130048
    %68 = vst.msk [vmem:[#allocation2] sm:$0xff] %vm67, %v66
    // Predicated region
    $region14: #{tpu_custom_call.1} parent=1 // pred_check
      _
    $region15: #{tpu_custom_call.1} parent=1 // pred_check_branch
      %70 = sbr.rel (0) target = $region17
    $region16: #{tpu_custom_call.1} parent=1 // pred_region
      %s72 = ssub.s32 128, 128
      %73 = vsyncadd [#allocation3], %s72
      %s75 = sshll.u32 [#allocation2], 4
      %s76 = int_to_ptr.vmem [resolvable:$true] %s75
      %78 = dma.vmem_to_hbm [thread:$0]  %s76, 128, %s3, [#allocation3]
    $region17: #{tpu_custom_call.1} parent=1 // pred_fallthru
      _
    // Predicated region
    $region18: #{tpu_custom_call.1} parent=1 // pred_check
      _
    $region19: #{tpu_custom_call.1} parent=1 // pred_check_branch
      %80 = sbr.rel (0) target = $region21
    $region20: #{tpu_custom_call.1} parent=1 // pred_region
      %81 = dma.done [#allocation3], 128
    $region21: #{tpu_custom_call.1} parent=1 // pred_fallthru
      _
    %82 = vsyncpa [#allocation3], 1

</llo_original>
